<compile_context>
chip_gen: v6e
topology: v6e:2x2x1
jax: 0.10.0
libtpu: 0.0.40
codegen_flags: <defaults>
</compile_context>

<pallas_src>
import functools

import jax
import jax.numpy as jnp
from jax import lax
from jax.experimental import pallas as pl
from jax.experimental.pallas import tpu as pltpu


def _sinkhorn_kernel(x_ref, yt_ref, loss_ref, *plan_refs, gamma, n_iters):
    x = x_ref[...]          # [N, D] float32
    yt = yt_ref[...]        # [D, M] float32 (targets pre-transposed in wrapper)
    N = x.shape[0]
    M = yt.shape[1]

    # F.normalize(dim=-1, p=2): v / max(||v||_2, 1e-12)
    #   == v * rsqrt(max(||v||^2, 1e-24))   (rsqrt runs on the EUP slot)
    eps2 = jnp.float32(1e-24)
    xn = x * lax.rsqrt(jnp.maximum(jnp.sum(x * x, axis=1, keepdims=True), eps2))
    ytn = yt * lax.rsqrt(jnp.maximum(jnp.sum(yt * yt, axis=0, keepdims=True), eps2))

    # Gram matrix G[i, j] = <xn_i, yn_j>: plain NN matmul on the MXU.
    G = jnp.dot(xn, ytn, preferred_element_type=jnp.float32)       # [N, M]

    # C = 2 - 2G ;  K = exp(-C/gamma) = exp((G - 1) * (2/gamma)); C never built.
    K = jnp.exp((G - 1.0) * jnp.float32(2.0 / gamma))               # [N, M]

    a_col = jnp.full((N, 1), 1.0 / N, dtype=jnp.float32)
    b_row = jnp.full((1, M), 1.0 / M, dtype=jnp.float32)

    # Exact replication of the PyTorch loop, including its list-indexing quirk
    # (lefts[i-1] at i == 0 picks the last element).  Unrolled at trace time.
    # The two matvecs are expressed as VPU broadcast-mul + XLU axis reductions
    # instead of free-dim-1 MXU matmuls (latency-bound serial chain).
    lefts = [jnp.ones((N, 1), dtype=jnp.float32)]
    rights = []
    for i in range(n_iters):
        # lefts[i-1]^T @ K  -> [1, M]  (sublane reduce)
        lk = jnp.sum(lefts[i - 1] * K, axis=0, keepdims=True)
        rights.append(b_row / lk)
        # K @ rights[i]^T   -> [N, 1]  (lane reduce)
        kr = jnp.sum(K * rights[i], axis=1, keepdims=True)
        lefts.append(a_col / kr)

    transport_plan = lefts[-1] * K * rights[-1]                     # [N, M]

    # loss = sum(C*T) = sum((2 - 2G)*T) = 2 * sum(T * (1 - G))  (single fused
    # elementwise pass + one reduction).
    loss_ref[0, 0] = 2.0 * jnp.sum(transport_plan * (1.0 - G))

    if plan_refs:   # only present (and only written back) when requested
        plan_refs[0][...] = transport_plan


def _vmem_limit_bytes(N, M, D, with_plan):
    nm = N * M * 4
    nd = (N * D + M * D) * 4
    # double-buffered inputs/outputs + a handful of resident [N,M] temporaries
    est = 4 * nd + (8 + (2 if with_plan else 0)) * nm + (2 << 20)
    try:
        phys = int(pltpu.get_tpu_info().vmem_capacity_bytes)
    except Exception:  # pragma: no cover - conservative fallback
        phys = 64 << 20
    cap = int(phys * 0.8)          # leave headroom for compiler scratch
    floor = min(32 << 20, cap)
    return int(max(min(est, cap), floor))


def sinkhorn_loss_batched(outputs, targets, gamma=1.0, n_iters=10,
                          return_transport_plan=False):
    """Batched Sinkhorn loss: outputs [B,N,D], targets [B,M,D] -> losses [B]."""
    if n_iters < 1:
        # The PyTorch reference raises IndexError (rights[-1] on []) for
        # n_iters == 0; fail with a clearer message here.
        raise ValueError("n_iters must be >= 1")

    outputs = jnp.asarray(outputs, dtype=jnp.float32)
    targets = jnp.asarray(targets, dtype=jnp.float32)
    B, N, D = outputs.shape
    _, M, _ = targets.shape

    # Wrapper-side transpose: the kernel's Gram contraction stays NN (no
    # in-kernel vxpose of the RHS); this op is off the kernel's critical path.
    targets_t = jnp.swapaxes(targets, -1, -2)                       # [B, D, M]

    kernel = functools.partial(_sinkhorn_kernel, gamma=float(gamma),
                               n_iters=int(n_iters))

    loss_shape = jax.ShapeDtypeStruct((B, 1), jnp.float32)
    loss_spec = pl.BlockSpec((1, 1), lambda b: (b, 0),
                             memory_space=pltpu.SMEM)

    in_specs = [
        pl.BlockSpec((None, N, D), lambda b: (b, 0, 0)),
        pl.BlockSpec((None, D, M), lambda b: (b, 0, 0)),
    ]

    if return_transport_plan:
        out_shape = (loss_shape, jax.ShapeDtypeStruct((B, N, M), jnp.float32))
        out_specs = (loss_spec,
                     pl.BlockSpec((None, N, M), lambda b: (b, 0, 0)))
    else:
        out_shape = loss_shape
        out_specs = loss_spec

    result = pl.pallas_call(
        kernel,
        grid=(B,),
        out_shape=out_shape,
        in_specs=in_specs,
        out_specs=out_specs,
        compiler_params=pltpu.CompilerParams(
            dimension_semantics=("parallel",),
            vmem_limit_bytes=_vmem_limit_bytes(N, M, D,
                                               return_transport_plan)),
    )(outputs, targets_t)

    if return_transport_plan:
        loss, plan = result
        return loss[:, 0], plan
    return result[:, 0]


def sinkhorn_loss(outputs, targets, gamma=1.0, n_iters=10,
                  return_transport_plan=False):
    """Pallas TPU implementation of SinkhornLoss.forward (single pair)."""
    outputs = jnp.asarray(outputs, dtype=jnp.float32)[None]         # [1, N, D]
    targets = jnp.asarray(targets, dtype=jnp.float32)[None]         # [1, M, D]
    res = sinkhorn_loss_batched(outputs, targets, gamma, n_iters,
                                return_transport_plan)
    if return_transport_plan:
        loss, plan = res
        return loss[0], plan[0]
    return res[0]


def _sinkhorn_loss_ref(outputs, targets, gamma=1.0, n_iters=10):
    """Pure-JAX reference mirroring the PyTorch code exactly."""
    eps = 1e-12
    xn = outputs / jnp.maximum(
        jnp.linalg.norm(outputs, axis=-1, keepdims=True), eps)
    yn = targets / jnp.maximum(
        jnp.linalg.norm(targets, axis=-1, keepdims=True), eps)
    C = 2.0 - 2.0 * jnp.sum(xn[:, None, :] * yn[None, :, :], axis=-1)
    K = jnp.exp(-C / gamma)
    N, M = C.shape
    a = jnp.full((N,), 1.0 / N, jnp.float32)
    b = jnp.full((M,), 1.0 / M, jnp.float32)
    lefts = [jnp.ones_like(a)]
    rights = []
    for i in range(n_iters):
        rights += [b / jnp.matmul(lefts[i - 1], K)]
        lefts += [a / jnp.matmul(K, rights[i])]
    T = lefts[-1][:, None] * K * rights[-1][None, :]
    return jnp.sum(C * T), T


if __name__ == "__main__":
    key = jax.random.PRNGKey(0)
    k1, k2, k3, k4 = jax.random.split(key, 4)
    N, D = 8, 32  # outputs: [N, D], targets: [N, D]
    outputs = jax.random.normal(k1, (N, D), dtype=jnp.float32)
    targets = jax.random.normal(k2, (N, D), dtype=jnp.float32)

    # Loss-only path (no transport-plan output compiled or written).
    loss = jax.block_until_ready(sinkhorn_loss(outputs, targets, 1.0, 10))

    # Path that also returns the transport plan.
    loss_p, plan = sinkhorn_loss(outputs, targets, 1.0, 10,
                                 return_transport_plan=True)
    loss_p, plan = jax.block_until_ready((loss_p, plan))

    ref_loss, ref_plan = _sinkhorn_loss_ref(outputs, targets, 1.0, 10)
    ref_loss = jax.block_until_ready(ref_loss)

    assert jnp.isfinite(loss)
    assert jnp.allclose(loss, ref_loss, rtol=1e-4, atol=1e-5), (loss, ref_loss)
    assert jnp.allclose(loss_p, ref_loss, rtol=1e-4, atol=1e-5), (loss_p, ref_loss)
    assert jnp.allclose(plan, ref_plan, rtol=1e-4, atol=1e-6)

    # Batched path: B problems in one launch over a parallel grid axis.
    B = 4
    b_out = jax.random.normal(k3, (B, N, D), dtype=jnp.float32)
    b_tgt = jax.random.normal(k4, (B, N, D), dtype=jnp.float32)
    b_loss, b_plan = sinkhorn_loss_batched(b_out, b_tgt, 1.0, 10,
                                           return_transport_plan=True)
    b_loss, b_plan = jax.block_until_ready((b_loss, b_plan))
    for b in range(B):
        rl, rp = _sinkhorn_loss_ref(b_out[b], b_tgt[b], 1.0, 10)
        assert jnp.allclose(b_loss[b], rl, rtol=1e-4, atol=1e-5), (b, b_loss[b], rl)
        assert jnp.allclose(b_plan[b], rp, rtol=1e-4, atol=1e-6)

    print("KERNEL_OK")
</pallas_src>

<mosaic_0001>
module attributes {stable_mosaic.version = 11 : i64} {
  func.func @_sinkhorn_kernel(%arg0: i32, %arg1: memref<1x8x32xf32, #tpu.memory_space<vmem>>, %arg2: memref<1x32x8xf32, #tpu.memory_space<vmem>>, %arg3: memref<1x1xf32, #tpu.memory_space<smem>>) attributes {dimension_semantics = [#tpu.dimension_semantics<parallel>], iteration_bounds = array<i64: 1>, scalar_prefetch = 0 : i64, scratch_operands = 0 : i64, tpu.core_type = #tpu.core_type<tc>, window_params = [{transform_indices = @transform_0, window_bounds = array<i64: 1, 8, 32>}, {transform_indices = @transform_1, window_bounds = array<i64: 1, 32, 8>}, {transform_indices = @transform_2, window_bounds = array<i64: 1, 1>}]} {
    %c0 = arith.constant 0 : index
    %c0_0 = arith.constant 0 : index
    %c0_1 = arith.constant 0 : index
    %0 = vector.load %arg1[%c0, %c0_0, %c0_1] : memref<1x8x32xf32, #tpu.memory_space<vmem>>, vector<1x8x32xf32>
    %1 = vector.shape_cast %0 : vector<1x8x32xf32> to vector<8x32xf32>
    %c0_2 = arith.constant 0 : index
    %c0_3 = arith.constant 0 : index
    %c0_4 = arith.constant 0 : index
    %2 = vector.load %arg2[%c0_2, %c0_3, %c0_4] : memref<1x32x8xf32, #tpu.memory_space<vmem>>, vector<1x32x8xf32>
    %3 = vector.shape_cast %2 : vector<1x32x8xf32> to vector<32x8xf32>
    %4 = arith.mulf %1, %1 : vector<8x32xf32>
    %cst = arith.constant dense<0.000000e+00> : vector<8xf32>
    %5 = vector.multi_reduction <add>, %4, %cst [1] : vector<8x32xf32> to vector<8xf32>
    %6 = vector.shape_cast %5 : vector<8xf32> to vector<8x1xf32>
    %cst_5 = arith.constant 1.000000e-24 : f32
    %7 = vector.broadcast %cst_5 : f32 to vector<8x1xf32>
    %8 = arith.maximumf %6, %7 : vector<8x1xf32>
    %9 = math.rsqrt %8 : vector<8x1xf32>
    %10 = vector.broadcast %9 : vector<8x1xf32> to vector<8x32xf32>
    %11 = arith.mulf %1, %10 : vector<8x32xf32>
    %12 = arith.mulf %3, %3 : vector<32x8xf32>
    %cst_6 = arith.constant dense<0.000000e+00> : vector<8xf32>
    %13 = vector.multi_reduction <add>, %12, %cst_6 [0] : vector<32x8xf32> to vector<8xf32>
    %14 = vector.shape_cast %13 : vector<8xf32> to vector<1x8xf32>
    %cst_7 = arith.constant 1.000000e-24 : f32
    %15 = vector.broadcast %cst_7 : f32 to vector<1x8xf32>
    %16 = arith.maximumf %14, %15 : vector<1x8xf32>
    %17 = math.rsqrt %16 : vector<1x8xf32>
    %18 = vector.broadcast %17 : vector<1x8xf32> to vector<32x8xf32>
    %19 = arith.mulf %3, %18 : vector<32x8xf32>
    %cst_8 = arith.constant dense<0.000000e+00> : vector<8x8xf32>
    %20 = tpu.matmul %11, %19, %cst_8 {dimension_numbers = #tpu.dot_dimension_numbers<[1], [0], [0], [1], [0, 0, 1, 1], [], []>} : vector<8x32xf32>, vector<32x8xf32>, vector<8x8xf32> -> vector<8x8xf32>
    %cst_9 = arith.constant 1.000000e+00 : f32
    %21 = vector.broadcast %cst_9 : f32 to vector<8x8xf32>
    %22 = arith.subf %20, %21 : vector<8x8xf32>
    %cst_10 = arith.constant 2.000000e+00 : f32
    %23 = vector.broadcast %cst_10 : f32 to vector<8x8xf32>
    %24 = arith.mulf %22, %23 : vector<8x8xf32>
    %25 = math.exp %24 : vector<8x8xf32>
    %cst_11 = arith.constant 1.250000e-01 : f32
    %26 = vector.broadcast %cst_11 : f32 to vector<8x1xf32>
    %cst_12 = arith.constant 1.250000e-01 : f32
    %27 = vector.broadcast %cst_12 : f32 to vector<1x8xf32>
    %cst_13 = arith.constant 1.000000e+00 : f32
    %28 = vector.broadcast %cst_13 : f32 to vector<8x1xf32>
    %29 = vector.broadcast %28 : vector<8x1xf32> to vector<8x8xf32>
    %30 = arith.mulf %29, %25 : vector<8x8xf32>
    %cst_14 = arith.constant dense<0.000000e+00> : vector<8xf32>
    %31 = vector.multi_reduction <add>, %30, %cst_14 [0] : vector<8x8xf32> to vector<8xf32>
    %32 = vector.shape_cast %31 : vector<8xf32> to vector<1x8xf32>
    %33 = arith.divf %27, %32 : vector<1x8xf32>
    %34 = vector.broadcast %33 : vector<1x8xf32> to vector<8x8xf32>
    %35 = arith.mulf %25, %34 : vector<8x8xf32>
    %cst_15 = arith.constant dense<0.000000e+00> : vector<8xf32>
    %36 = vector.multi_reduction <add>, %35, %cst_15 [1] : vector<8x8xf32> to vector<8xf32>
    %37 = vector.shape_cast %36 : vector<8xf32> to vector<8x1xf32>
    %38 = arith.divf %26, %37 : vector<8x1xf32>
    %39 = vector.broadcast %38 : vector<8x1xf32> to vector<8x8xf32>
    %40 = arith.mulf %39, %25 : vector<8x8xf32>
    %cst_16 = arith.constant dense<0.000000e+00> : vector<8xf32>
    %41 = vector.multi_reduction <add>, %40, %cst_16 [0] : vector<8x8xf32> to vector<8xf32>
    %42 = vector.shape_cast %41 : vector<8xf32> to vector<1x8xf32>
    %43 = arith.divf %27, %42 : vector<1x8xf32>
    %44 = vector.broadcast %43 : vector<1x8xf32> to vector<8x8xf32>
    %45 = arith.mulf %25, %44 : vector<8x8xf32>
    %cst_17 = arith.constant dense<0.000000e+00> : vector<8xf32>
    %46 = vector.multi_reduction <add>, %45, %cst_17 [1] : vector<8x8xf32> to vector<8xf32>
    %47 = vector.shape_cast %46 : vector<8xf32> to vector<8x1xf32>
    %48 = arith.divf %26, %47 : vector<8x1xf32>
    %49 = vector.broadcast %48 : vector<8x1xf32> to vector<8x8xf32>
    %50 = arith.mulf %49, %25 : vector<8x8xf32>
    %cst_18 = arith.constant dense<0.000000e+00> : vector<8xf32>
    %51 = vector.multi_reduction <add>, %50, %cst_18 [0] : vector<8x8xf32> to vector<8xf32>
    %52 = vector.shape_cast %51 : vector<8xf32> to vector<1x8xf32>
    %53 = arith.divf %27, %52 : vector<1x8xf32>
    %54 = vector.broadcast %53 : vector<1x8xf32> to vector<8x8xf32>
    %55 = arith.mulf %25, %54 : vector<8x8xf32>
    %cst_19 = arith.constant dense<0.000000e+00> : vector<8xf32>
    %56 = vector.multi_reduction <add>, %55, %cst_19 [1] : vector<8x8xf32> to vector<8xf32>
    %57 = vector.shape_cast %56 : vector<8xf32> to vector<8x1xf32>
    %58 = arith.divf %26, %57 : vector<8x1xf32>
    %59 = vector.broadcast %58 : vector<8x1xf32> to vector<8x8xf32>
    %60 = arith.mulf %59, %25 : vector<8x8xf32>
    %cst_20 = arith.constant dense<0.000000e+00> : vector<8xf32>
    %61 = vector.multi_reduction <add>, %60, %cst_20 [0] : vector<8x8xf32> to vector<8xf32>
    %62 = vector.shape_cast %61 : vector<8xf32> to vector<1x8xf32>
    %63 = arith.divf %27, %62 : vector<1x8xf32>
    %64 = vector.broadcast %63 : vector<1x8xf32> to vector<8x8xf32>
    %65 = arith.mulf %25, %64 : vector<8x8xf32>
    %cst_21 = arith.constant dense<0.000000e+00> : vector<8xf32>
    %66 = vector.multi_reduction <add>, %65, %cst_21 [1] : vector<8x8xf32> to vector<8xf32>
    %67 = vector.shape_cast %66 : vector<8xf32> to vector<8x1xf32>
    %68 = arith.divf %26, %67 : vector<8x1xf32>
    %69 = vector.broadcast %68 : vector<8x1xf32> to vector<8x8xf32>
    %70 = arith.mulf %69, %25 : vector<8x8xf32>
    %cst_22 = arith.constant dense<0.000000e+00> : vector<8xf32>
    %71 = vector.multi_reduction <add>, %70, %cst_22 [0] : vector<8x8xf32> to vector<8xf32>
    %72 = vector.shape_cast %71 : vector<8xf32> to vector<1x8xf32>
    %73 = arith.divf %27, %72 : vector<1x8xf32>
    %74 = vector.broadcast %73 : vector<1x8xf32> to vector<8x8xf32>
    %75 = arith.mulf %25, %74 : vector<8x8xf32>
    %cst_23 = arith.constant dense<0.000000e+00> : vector<8xf32>
    %76 = vector.multi_reduction <add>, %75, %cst_23 [1] : vector<8x8xf32> to vector<8xf32>
    %77 = vector.shape_cast %76 : vector<8xf32> to vector<8x1xf32>
    %78 = arith.divf %26, %77 : vector<8x1xf32>
    %79 = vector.broadcast %78 : vector<8x1xf32> to vector<8x8xf32>
    %80 = arith.mulf %79, %25 : vector<8x8xf32>
    %81 = vector.broadcast %73 : vector<1x8xf32> to vector<8x8xf32>
    %82 = arith.mulf %80, %81 : vector<8x8xf32>
    %cst_24 = arith.constant 1.000000e+00 : f32
    %83 = vector.broadcast %cst_24 : f32 to vector<8x8xf32>
    %84 = arith.subf %83, %20 : vector<8x8xf32>
    %85 = arith.mulf %82, %84 : vector<8x8xf32>
    %86 = vector.shape_cast %85 : vector<8x8xf32> to vector<1x8x8xf32>
    %cst_25 = arith.constant dense<0.000000e+00> : vector<1xf32>
    %87 = vector.multi_reduction <add>, %86, %cst_25 [1, 2] : vector<1x8x8xf32> to vector<1xf32>
    %88 = vector.shape_cast %87 : vector<1xf32> to vector<1x1x1xf32>
    %89 = vector.extract %88[0, 0, 0] : f32 from vector<1x1x1xf32>
    %cst_26 = arith.constant 2.000000e+00 : f32
    %90 = arith.mulf %cst_26, %89 : f32
    %c0_27 = arith.constant 0 : index
    %c0_28 = arith.constant 0 : index
    %91 = memref.load %arg3[%c0_27, %c0_28] : memref<1x1xf32, #tpu.memory_space<smem>>
    memref.store %90, %arg3[%c0_27, %c0_28] : memref<1x1xf32, #tpu.memory_space<smem>>
    return
  }
  func.func @transform_0(%arg0: i32) -> (i32, i32, i32) {
    %c0_i32 = arith.constant 0 : i32
    %c0_i32_0 = arith.constant 0 : i32
    %c0_i32_1 = arith.constant 0 : i32
    return %arg0, %c0_i32, %c0_i32_0 : i32, i32, i32
  }
  func.func @transform_1(%arg0: i32) -> (i32, i32, i32) {
    %c0_i32 = arith.constant 0 : i32
    %c0_i32_0 = arith.constant 0 : i32
    %c0_i32_1 = arith.constant 0 : i32
    return %arg0, %c0_i32, %c0_i32_0 : i32, i32, i32
  }
  func.func @transform_2(%arg0: i32) -> (i32, i32) {
    %c0_i32 = arith.constant 0 : i32
    %c0_i32_0 = arith.constant 0 : i32
    return %arg0, %c0_i32 : i32, i32
  }
}

</mosaic_0001>

<llo_original>
// kernel: tpu_custom_call.1
$region0: #{tpu_custom_call.1}
  #allocation0 [shape = 'u32[]', space=smem, size = 0x4, offset = 0x4, fixed_abs, tag = 'smem constant byte address 0x4 - core index']
  #allocation1 [shape = 'u32[144,128]{1,0:T(1,128)}', space=vmem, size = 0x12000, scoped, tag = 'internal scratch']
  %s0 = inlined_call_operand.vmem [shape: f32[1,8,32], index: 0, kind: input, shape index: {}]
  %s1 = inlined_call_operand.vmem [shape: f32[1,32,8], index: 1, kind: input, shape index: {}]
  %s2 = inlined_call_operand.hbm [shape: f32[1,1], index: 2, kind: output, shape index: {}]
  %s3 = sld [smem:[#allocation0]]
  $region18: #{tpu_custom_call.1} parent=0
    _
  %s5 = ssub.s32 1, %s3
  %s6 = scalar_select 0, %s5, %s3
  $region1: #{tpu_custom_call.1} parent=0
    #allocation2 [shape = 'u8[512]{0}', space=smem, size = 0x200, scoped, tag = 'output window, operand 0, single buffered']
    #allocation3 [shape = 's32[1]{0}', space=sflag, size = 0x4, scoped, tag = 'scoped memory for tpu_custom_call.1']
    %7 = vsyncpa [#allocation3], 0
    // Predicated region
    $region2: #{tpu_custom_call.1} parent=1 // pred_check
      _
    $region3: #{tpu_custom_call.1} parent=1 // pred_check_branch
      %9 = sbr.rel (0) target = $region5
    $region4: #{tpu_custom_call.1} parent=1 // pred_region
      _
    $region5: #{tpu_custom_call.1} parent=1 // pred_fallthru
      _
    // Predicated region
    $region6: #{tpu_custom_call.1} parent=1 // pred_check
      _
    $region7: #{tpu_custom_call.1} parent=1 // pred_check_branch
      %11 = sbr.rel (0) target = $region9
    $region8: #{tpu_custom_call.1} parent=1 // pred_region
      _
    $region9: #{tpu_custom_call.1} parent=1 // pred_fallthru
      _
    %v12 = vld [vmem:[%s0] sm:$0xff]
    %v13 = vld [vmem:[%s1] sm:$0xff]
    %v14 = vld [vmem:[%s1 + $0x8] sm:$0xff]
    %v15 = vld [vmem:[%s1 + $0x10] sm:$0xff]
    %v16 = vld [vmem:[%s1 + $0x18] sm:$0xff]
    %v17 = vmul.f32 %v12, %v12
    %vm18 = vcmask 261120
    %v19 = vsel %vm18, %v17, 0.0
    %20 = vadd.xlane.f32.xlu0 %v19
    %v21 = vpop.xlane.xlu0 %20
    %v22 = vmax.f32 %v21, 1e-24
    %v23 = vrsqrt.pop %v22
    %v24 = vmul.f32 %v12, %v23
    %v25 = vmul.f32 %v13, %v13
    %v26 = vmul.f32 %v14, %v14
    %v27 = vmul.f32 %v15, %v15
    %v28 = vmul.f32 %v16, %v16
    %vm29 = vcmask 64512
    %v30 = vsel %vm29, %v25, 0.0
    %v31 = vsel %vm29, %v26, 0.0
    %v32 = vadd.f32 %v30, %v31
    %v33 = vsel %vm29, %v27, 0.0
    %v34 = vadd.f32 %v32, %v33
    %v35 = vsel %vm29, %v28, 0.0
    %v36 = vadd.f32 %v34, %v35
    %v37 = vrot.slane %v36, 4
    %v38 = vadd.f32 %v36, %v37
    %v39 = vrot.slane %v38, 2
    %v40 = vadd.f32 %v38, %v39
    %v41 = vrot.slane %v40, 1
    %v42 = vadd.f32 %v40, %v41
    %v43 = vmax.f32 %v42, 1e-24
    %v44 = vrsqrt.pop %v43
    %v45 = vmul.f32 %v13, %v44
    %v46 = vmul.f32 %v14, %v44
    %v47 = vmul.f32 %v15, %v44
    %v48 = vmul.f32 %v16, %v44
    %v50 = vsel %vm18, %v24, 0
    %52 = vmatprep.subr.mxu0 0.0
    %53 = vmatpush1.msra.mxu0 0.0
    %54 = vmatprep.subr.mxu0 0.0
    %55 = vmatpush1.msra.mxu0 0.0
    %56 = vmatprep.subr.mxu0 0.0
    %57 = vmatpush1.msra.mxu0 0.0
    %58 = vmatprep.subr.mxu0 0.0
    %59 = vmatpush1.msra.mxu0 0.0
    %60 = vmatprep.subr.mxu0 0.0
    %61 = vmatpush1.msra.mxu0 0.0
    %62 = vmatprep.subr.mxu0 0.0
    %63 = vmatpush1.msra.mxu0 0.0
    %64 = vmatprep.subr.mxu0 0.0
    %65 = vmatpush1.msra.mxu0 0.0
    %66 = vmatprep.subr.mxu0 0.0
    %67 = vmatpush1.msra.mxu0 0.0
    %68 = vmatprep.subr.mxu0 0.0
    %69 = vmatpush1.msra.mxu0 0.0
    %70 = vmatprep.subr.mxu0 0.0
    %71 = vmatpush1.msra.mxu0 0.0
    %72 = vmatprep.subr.mxu0 0.0
    %73 = vmatpush1.msra.mxu0 0.0
    %74 = vmatprep.subr.mxu0 0.0
    %75 = vmatpush1.msra.mxu0 0.0
    %76 = vmatprep.subr.mxu0 0.0
    %77 = vmatpush1.msra.mxu0 %v48
    %78 = vmatprep.subr.mxu0 0.0
    %79 = vmatpush1.msra.mxu0 %v47
    %80 = vmatprep.subr.mxu0 0.0
    %81 = vmatpush1.msra.mxu0 %v46
    %82 = vmatprep.subr.mxu0 0.0
    %83 = vmatpush1.msra.mxu0 %v45
    %84 = vmatprep.subr.mxu0 0.0
    %85 = vmatpush2.msra.mxu0 0.0
    %86 = vmatprep.subr.mxu0 0.0
    %87 = vmatpush2.msra.mxu0 0.0
    %88 = vmatprep.subr.mxu0 0.0
    %89 = vmatpush2.msra.mxu0 0.0
    %90 = vmatprep.subr.mxu0 0.0
    %91 = vmatpush2.msra.mxu0 0.0
    %92 = vmatprep.subr.mxu0 0.0
    %93 = vmatpush2.msra.mxu0 0.0
    %94 = vmatprep.subr.mxu0 0.0
    %95 = vmatpush2.msra.mxu0 0.0
    %96 = vmatprep.subr.mxu0 0.0
    %97 = vmatpush2.msra.mxu0 0.0
    %98 = vmatprep.subr.mxu0 0.0
    %99 = vmatpush2.msra.mxu0 0.0
    %100 = vmatprep.subr.mxu0 0.0
    %101 = vmatpush2.msra.mxu0 0.0
    %102 = vmatprep.subr.mxu0 0.0
    %103 = vmatpush2.msra.mxu0 0.0
    %104 = vmatprep.subr.mxu0 0.0
    %105 = vmatpush2.msra.mxu0 0.0
    %106 = vmatprep.subr.mxu0 0.0
    %107 = vmatpush2.msra.mxu0 0.0
    %108 = vmatprep.subr.mxu0 0.0
    %109 = vmatpush2.msra.mxu0 0.0
    %110 = vmatprep.subr.mxu0 0.0
    %111 = vmatpush2.msra.mxu0 0.0
    %112 = vmatprep.subr.mxu0 0.0
    %113 = vmatpush2.msra.mxu0 0.0
    %114 = vmatprep.subr.mxu0 0.0
    %115 = vmatpush2.msra.mxu0 0.0
    %116 = vmatprep.mubr.f32.mxu0 0.0
    %117 = vmatmul.mubr.f32.gmra.mxu0 %v50
    %v118 = vpop.f32.mrf.mxu0
    %v119 = vadd.f32 0.0, %v118
    %v120 = vpop.f32.mrf.mxu0
    %121 = vdwg.mxu0
    %v122 = vsub.f32 %v119, 1.0
    %v123 = vmul.f32 %v122, 2.0
    %v124 = vmul.f32 %v123, 1.442695
    %v125 = vpow.pop %v124
    %v126 = vsel %vm29, %v125, 0.0
    %v127 = vrot.slane %v126, 4
    %v128 = vadd.f32 %v126, %v127
    %v129 = vrot.slane %v128, 2
    %v130 = vadd.f32 %v128, %v129
    %v131 = vrot.slane %v130, 1
    %v132 = vadd.f32 %v130, %v131
    %v133 = vrcp.pop %v132
    %v134 = vmul.f32 0.125, %v133
    %v135 = vmul.f32 %v125, %v134
    %v136 = vsel %vm29, %v135, 0.0
    %137 = vadd.xlane.f32.xlu0 %v136
    %v138 = vpop.xlane.xlu0 %137
    %v139 = vrcp.pop %v138
    %v140 = vmul.f32 0.125, %v139
    %v141 = vmul.f32 %v140, %v125
    %v142 = vsel %vm29, %v141, 0.0
    %v143 = vrot.slane %v142, 4
    %v144 = vadd.f32 %v142, %v143
    %v145 = vrot.slane %v144, 2
    %v146 = vadd.f32 %v144, %v145
    %v147 = vrot.slane %v146, 1
    %v148 = vadd.f32 %v146, %v147
    %v149 = vrcp.pop %v148
    %v150 = vmul.f32 0.125, %v149
    %v151 = vmul.f32 %v125, %v150
    %v152 = vsel %vm29, %v151, 0.0
    %153 = vadd.xlane.f32.xlu0 %v152
    %v154 = vpop.xlane.xlu0 %153
    %v155 = vrcp.pop %v154
    %v156 = vmul.f32 0.125, %v155
    %v157 = vmul.f32 %v156, %v125
    %v158 = vsel %vm29, %v157, 0.0
    %v159 = vrot.slane %v158, 4
    %v160 = vadd.f32 %v158, %v159
    %v161 = vrot.slane %v160, 2
    %v162 = vadd.f32 %v160, %v161
    %v163 = vrot.slane %v162, 1
    %v164 = vadd.f32 %v162, %v163
    %v165 = vrcp.pop %v164
    %v166 = vmul.f32 0.125, %v165
    %v167 = vmul.f32 %v125, %v166
    %v168 = vsel %vm29, %v167, 0.0
    %169 = vadd.xlane.f32.xlu0 %v168
    %v170 = vpop.xlane.xlu0 %169
    %v171 = vrcp.pop %v170
    %v172 = vmul.f32 0.125, %v171
    %v173 = vmul.f32 %v172, %v125
    %v174 = vsel %vm29, %v173, 0.0
    %v175 = vrot.slane %v174, 4
    %v176 = vadd.f32 %v174, %v175
    %v177 = vrot.slane %v176, 2
    %v178 = vadd.f32 %v176, %v177
    %v179 = vrot.slane %v178, 1
    %v180 = vadd.f32 %v178, %v179
    %v181 = vrcp.pop %v180
    %v182 = vmul.f32 0.125, %v181
    %v183 = vmul.f32 %v125, %v182
    %v184 = vsel %vm29, %v183, 0.0
    %185 = vadd.xlane.f32.xlu0 %v184
    %v186 = vpop.xlane.xlu0 %185
    %v187 = vrcp.pop %v186
    %v188 = vmul.f32 0.125, %v187
    %v189 = vmul.f32 %v188, %v125
    %v190 = vsel %vm29, %v189, 0.0
    %v191 = vrot.slane %v190, 4
    %v192 = vadd.f32 %v190, %v191
    %v193 = vrot.slane %v192, 2
    %v194 = vadd.f32 %v192, %v193
    %v195 = vrot.slane %v194, 1
    %v196 = vadd.f32 %v194, %v195
    %v197 = vrcp.pop %v196
    %v198 = vmul.f32 0.125, %v197
    %v199 = vmul.f32 %v125, %v198
    %v200 = vsel %vm29, %v199, 0.0
    %201 = vadd.xlane.f32.xlu0 %v200
    %v202 = vpop.xlane.xlu0 %201
    %v203 = vrcp.pop %v202
    %v204 = vmul.f32 0.125, %v203
    %v205 = vmul.f32 %v204, %v125
    %v206 = vmul.f32 %v205, %v198
    %v207 = vsub.f32 1.0, %v119
    %v208 = vmul.f32 %v206, %v207
    %v209 = vsel %vm29, %v208, 0.0
    %210 = vadd.xlane.f32.xlu0 %v209
    %v211 = vpop.xlane.xlu0 %210
    %v212 = vrot.slane %v211, 4
    %v213 = vadd.f32 %v211, %v212
    %v214 = vrot.slane %v213, 2
    %v215 = vadd.f32 %v213, %v214
    %v216 = vrot.slane %v215, 1
    %v217 = vadd.f32 %v215, %v216
    %s218 = vtos %v217
    %s219 = smul.f32 %s218, 2.0
    %s220 = scalar_lea.smem [#allocation2], 0
    %221 = sst [smem:[%s220]] %s219
    // Predicated region
    $region10: #{tpu_custom_call.1} parent=1 // pred_check
      _
    $region11: #{tpu_custom_call.1} parent=1 // pred_check_branch
      %223 = sbr.rel (0) target = $region13
    $region12: #{tpu_custom_call.1} parent=1 // pred_region
      %s225 = ssub.s32 16, 16
      %226 = vsyncadd [#allocation3], %s225
      %229 = dma.smem_to_hbm [#allocation2], 16, %s2, [#allocation3]
    $region13: #{tpu_custom_call.1} parent=1 // pred_fallthru
      _
    // Predicated region
    $region14: #{tpu_custom_call.1} parent=1 // pred_check
      _
    $region15: #{tpu_custom_call.1} parent=1 // pred_check_branch
      %231 = sbr.rel (0) target = $region17
    $region16: #{tpu_custom_call.1} parent=1 // pred_region
      %232 = dma.done [#allocation3], 16
    $region17: #{tpu_custom_call.1} parent=1 // pred_fallthru
      _
    %233 = sfence
    %234 = vsyncpa [#allocation3], 1

</llo_original>
